<compile_context>
chip_gen: v6e
topology: v6e:2x2x1
jax: 0.10.0
libtpu: 0.0.40
codegen_flags: <defaults>
</compile_context>

<pallas_src>
import jax
import jax.numpy as jnp
from jax import lax
from jax.experimental import pallas as pl
from jax.experimental.pallas import tpu as pltpu


def _linear_kernel(x_ref, w_ref, y_ref):
    # x: (TB, n_feature), w: (n_linear, n_feature) -- nn.Linear.weight layout.
    # y = x @ w.T done directly on the MXU by contracting the last axes of both
    # operands (no materialized transpose, f32 accumulation).
    y_ref[...] = lax.dot_general(
        x_ref[...], w_ref[...],
        dimension_numbers=(((1,), (1,)), ((), ())),
        preferred_element_type=jnp.float32,
    ).astype(y_ref.dtype)


def aton_linear(x, weight, *, tb=None):
    """Bias-free Linear: y = x @ weight.T  (weight is (n_linear, n_feature))."""
    B, n_feature = x.shape
    n_linear = weight.shape[0]

    # Tile the batch only when it is large; tile rows stay a multiple of 8
    # (sublane) and the feature/lane dims use the full array extents.
    if tb is None:
        tb = B if B <= 1024 else 1024
    grid = (pl.cdiv(B, tb),)

    return pl.pallas_call(
        _linear_kernel,
        out_shape=jax.ShapeDtypeStruct((B, n_linear), x.dtype),
        grid=grid,
        in_specs=[
            pl.BlockSpec((tb, n_feature), lambda i: (i, 0)),
            pl.BlockSpec((n_linear, n_feature), lambda i: (0, 0)),
        ],
        out_specs=pl.BlockSpec((tb, n_linear), lambda i: (i, 0)),
        compiler_params=pltpu.CompilerParams(
            dimension_semantics=("parallel",)),
    )(x, weight)


def aton_abla3_forward(x, weight, attn_net, clf_net):
    """Mirror of ATONabla3net.forward; returns (clf_net(y * attn), attn)."""
    # TODO(synk): attn_net / clf_net are constructor-injected nn.Modules whose
    # architecture is not given in the spec; they are applied here as plain JAX
    # callables instead of being fused into the Pallas kernel.
    y = aton_linear(x, weight)
    attn = attn_net(y)
    z = y * attn
    out = clf_net(z)
    return out, attn


def aton_get_lnr(x, weight):
    """Mirror of ATONabla3net.get_lnr."""
    return aton_linear(x, weight)


if __name__ == "__main__":
    key = jax.random.PRNGKey(0)
    B, n_feature, n_linear, n_class = 8, 32, 16, 2
    k_x, k_w, k_wa, k_wc = jax.random.split(key, 4)

    # Deterministic "nn.Linear"-style init (uniform in +-1/sqrt(n_feature)).
    bound = 1.0 / (n_feature ** 0.5)
    weight = jax.random.uniform(k_w, (n_linear, n_feature), jnp.float32,
                                minval=-bound, maxval=bound)
    x = jax.random.normal(k_x, (B, n_feature), jnp.float32)

    # Small deterministic stand-ins for the injected attn_net / clf_net.
    wa = 0.1 * jax.random.normal(k_wa, (n_linear, n_linear), jnp.float32)
    wc = 0.1 * jax.random.normal(k_wc, (n_class, n_linear), jnp.float32)
    attn_net = lambda h: jax.nn.softmax(h @ wa.T, axis=-1)
    clf_net = lambda h: h @ wc.T

    out, attn = aton_abla3_forward(x, weight, attn_net, clf_net)
    jax.block_until_ready((out, attn))

    # Reference check against plain JAX (same semantics as the PyTorch module).
    y_ref = x @ weight.T
    attn_ref = attn_net(y_ref)
    out_ref = clf_net(y_ref * attn_ref)

    y_pallas = aton_get_lnr(x, weight)
    jax.block_until_ready(y_pallas)

    assert jnp.allclose(y_pallas, y_ref, atol=1e-5), "linear mismatch vs reference"
    assert jnp.allclose(attn, attn_ref, atol=1e-5), "attn mismatch vs reference"
    assert jnp.allclose(out, out_ref, atol=1e-5), "output mismatch vs reference"

    print("KERNEL_OK")
</pallas_src>

<mosaic_0001>
module attributes {stable_mosaic.version = 11 : i64} {
  func.func @_linear_kernel(%arg0: i32, %arg1: memref<8x32xf32, #tpu.memory_space<vmem>>, %arg2: memref<16x32xf32, #tpu.memory_space<vmem>>, %arg3: memref<8x16xf32, #tpu.memory_space<vmem>>) attributes {dimension_semantics = [#tpu.dimension_semantics<parallel>], iteration_bounds = array<i64: 1>, scalar_prefetch = 0 : i64, scratch_operands = 0 : i64, tpu.core_type = #tpu.core_type<tc>, window_params = [{transform_indices = @transform_0, window_bounds = array<i64: 8, 32>}, {pipeline_mode = #tpu.pipeline_mode<synchronous>, transform_indices = @transform_1, window_bounds = array<i64: 16, 32>}, {transform_indices = @transform_2, window_bounds = array<i64: 8, 16>}]} {
    %c0 = arith.constant 0 : index
    %c0_0 = arith.constant 0 : index
    %0 = vector.load %arg1[%c0, %c0_0] : memref<8x32xf32, #tpu.memory_space<vmem>>, vector<8x32xf32>
    %c0_1 = arith.constant 0 : index
    %c0_2 = arith.constant 0 : index
    %1 = vector.load %arg2[%c0_1, %c0_2] : memref<16x32xf32, #tpu.memory_space<vmem>>, vector<16x32xf32>
    %cst = arith.constant dense<0.000000e+00> : vector<8x16xf32>
    %2 = tpu.matmul %0, %1, %cst {dimension_numbers = #tpu.dot_dimension_numbers<[1], [1], [0], [0], [0, 0, 1, 0], [], []>} : vector<8x32xf32>, vector<16x32xf32>, vector<8x16xf32> -> vector<8x16xf32>
    %c0_3 = arith.constant 0 : index
    %c0_4 = arith.constant 0 : index
    %3 = vector.load %arg3[%c0_3, %c0_4] : memref<8x16xf32, #tpu.memory_space<vmem>>, vector<8x16xf32>
    tpu.vector_store %arg3[%c0_3, %c0_4], %2 {strides = array<i32>} : memref<8x16xf32, #tpu.memory_space<vmem>>, vector<8x16xf32>,
    return
  }
  func.func @transform_0(%arg0: i32) -> (i32, i32) {
    %c0_i32 = arith.constant 0 : i32
    %c0_i32_0 = arith.constant 0 : i32
    return %arg0, %c0_i32 : i32, i32
  }
  func.func @transform_1(%arg0: i32) -> (i32, i32) {
    %c0_i32 = arith.constant 0 : i32
    %c0_i32_0 = arith.constant 0 : i32
    %c0_i32_1 = arith.constant 0 : i32
    return %c0_i32, %c0_i32_0 : i32, i32
  }
  func.func @transform_2(%arg0: i32) -> (i32, i32) {
    %c0_i32 = arith.constant 0 : i32
    %c0_i32_0 = arith.constant 0 : i32
    return %arg0, %c0_i32 : i32, i32
  }
}

</mosaic_0001>

<llo_original>
// kernel: tpu_custom_call.1
$region0: #{tpu_custom_call.1}
  #allocation0 [shape = 'u32[]', space=smem, size = 0x4, offset = 0x4, fixed_abs, tag = 'smem constant byte address 0x4 - core index']
  #allocation1 [shape = 'u32[144,128]{1,0:T(1,128)}', space=vmem, size = 0x12000, scoped, tag = 'internal scratch']
  %s0 = inlined_call_operand.hbm [shape: f32[8,32], index: 0, kind: input, shape index: {}]
  %s1 = inlined_call_operand.hbm [shape: f32[16,32], index: 1, kind: input, shape index: {}]
  %s2 = inlined_call_operand.hbm [shape: f32[8,16], index: 2, kind: output, shape index: {}]
  %s3 = sld [smem:[#allocation0]]
  $region26: #{tpu_custom_call.1} parent=0
    _
  %s5 = ssub.s32 1, %s3
  %s6 = scalar_select 0, %s5, %s3
  $region1: #{tpu_custom_call.1} parent=0
    #allocation2 [shape = 'u8[4096]{0}', space=vmem, size = 0x1000, scoped, tag = 'input window, operand 0, single buffered']
    #allocation3 [shape = 's32[1]{0}', space=sflag, size = 0x4, scoped, tag = 'scoped memory for tpu_custom_call.1']
    #allocation4 [shape = 's32[1]{0}', space=sflag, size = 0x4, scoped, tag = 'scoped memory for tpu_custom_call.1']
    #allocation5 [shape = 'u8[8192]{0}', space=vmem, size = 0x2000, scoped, tag = 'input window, operand 1, single buffered']
    #allocation6 [shape = 's32[1]{0}', space=sflag, size = 0x4, scoped, tag = 'scoped memory for tpu_custom_call.1']
    #allocation7 [shape = 'u8[4096]{0}', space=vmem, size = 0x1000, scoped, tag = 'output window, operand 0, single buffered']
    %7 = vsyncpa [#allocation3], 0
    %8 = vsyncpa [#allocation6], 0
    %9 = vsyncpa [#allocation4], 0
    // Predicated region
    $region2: #{tpu_custom_call.1} parent=1 // pred_check
      _
    $region3: #{tpu_custom_call.1} parent=1 // pred_check_branch
      %11 = sbr.rel (0) target = $region5
    $region4: #{tpu_custom_call.1} parent=1 // pred_region
      %s13 = ssub.s32 128, 128
      %14 = vsyncadd [#allocation3], %s13
      %s16 = sshll.u32 [#allocation2], 4
      %s17 = int_to_ptr.vmem [resolvable:$true] %s16
      %19 = dma.hbm_to_vmem [thread:$0]  %s0, 128, %s17, [#allocation3]
    $region5: #{tpu_custom_call.1} parent=1 // pred_fallthru
      _
    // Predicated region
    $region6: #{tpu_custom_call.1} parent=1 // pred_check
      _
    $region7: #{tpu_custom_call.1} parent=1 // pred_check_branch
      %21 = sbr.rel (0) target = $region9
    $region8: #{tpu_custom_call.1} parent=1 // pred_region
      %s23 = ssub.s32 256, 256
      %24 = vsyncadd [#allocation6], %s23
      %s25 = sshll.u32 [#allocation5], 4
      %s26 = int_to_ptr.vmem [resolvable:$true] %s25
      %31 = dma.hbm_to_vmem [thread:$0]  %s1, 256, %s26, [#allocation6], 128, 128, 8
    $region9: #{tpu_custom_call.1} parent=1 // pred_fallthru
      _
    // Predicated region
    $region10: #{tpu_custom_call.1} parent=1 // pred_check
      _
    $region11: #{tpu_custom_call.1} parent=1 // pred_check_branch
      %33 = sbr.rel (0) target = $region13
    $region12: #{tpu_custom_call.1} parent=1 // pred_region
      %34 = dma.done [#allocation3], 128
    $region13: #{tpu_custom_call.1} parent=1 // pred_fallthru
      _
    // Predicated region
    $region14: #{tpu_custom_call.1} parent=1 // pred_check
      _
    $region15: #{tpu_custom_call.1} parent=1 // pred_check_branch
      %36 = sbr.rel (0) target = $region17
    $region16: #{tpu_custom_call.1} parent=1 // pred_region
      %37 = dma.done [#allocation6], 256
    $region17: #{tpu_custom_call.1} parent=1 // pred_fallthru
      _
    %v38 = vld [vmem:[#allocation2] sm:$0xff]
    %v39 = vld [vmem:[#allocation5] sm:$0xff]
    %v40 = vld [vmem:[#allocation5 + $0x8] sm:$0xff]
    %vm41 = vcmask 261120
    %v43 = vsel %vm41, %v38, 0
    %v46 = vsel %vm41, %v39, 0
    %v49 = vsel %vm41, %v40, 0
    %51 = vmatprep.subr.mxu0 0.0
    %52 = vmatpush1.xpose.msra.mxu0 0.0
    %53 = vmatprep.subr.mxu0 0.0
    %54 = vmatpush1.xpose.msra.mxu0 0.0
    %55 = vmatprep.subr.mxu0 0.0
    %56 = vmatpush1.xpose.msra.mxu0 0.0
    %57 = vmatprep.subr.mxu0 0.0
    %58 = vmatpush1.xpose.msra.mxu0 0.0
    %59 = vmatprep.subr.mxu0 0.0
    %60 = vmatpush1.xpose.msra.mxu0 0.0
    %61 = vmatprep.subr.mxu0 0.0
    %62 = vmatpush1.xpose.msra.mxu0 0.0
    %63 = vmatprep.subr.mxu0 0.0
    %64 = vmatpush1.xpose.msra.mxu0 0.0
    %65 = vmatprep.subr.mxu0 0.0
    %66 = vmatpush1.xpose.msra.mxu0 0.0
    %67 = vmatprep.subr.mxu0 0.0
    %68 = vmatpush1.xpose.msra.mxu0 0.0
    %69 = vmatprep.subr.mxu0 0.0
    %70 = vmatpush1.xpose.msra.mxu0 0.0
    %71 = vmatprep.subr.mxu0 0.0
    %72 = vmatpush1.xpose.msra.mxu0 0.0
    %73 = vmatprep.subr.mxu0 0.0
    %74 = vmatpush1.xpose.msra.mxu0 0.0
    %75 = vmatprep.subr.mxu0 0.0
    %76 = vmatpush1.xpose.msra.mxu0 0.0
    %77 = vmatprep.subr.mxu0 0.0
    %78 = vmatpush1.xpose.msra.mxu0 0.0
    %79 = vmatprep.subr.mxu0 0.0
    %80 = vmatpush1.xpose.msra.mxu0 %v49
    %81 = vmatprep.subr.mxu0 0.0
    %82 = vmatpush1.xpose.msra.mxu0 %v46
    %83 = vmatprep.subr.mxu0 0.0
    %84 = vmatpush2.xpose.msra.mxu0 0.0
    %85 = vmatprep.subr.mxu0 0.0
    %86 = vmatpush2.xpose.msra.mxu0 0.0
    %87 = vmatprep.subr.mxu0 0.0
    %88 = vmatpush2.xpose.msra.mxu0 0.0
    %89 = vmatprep.subr.mxu0 0.0
    %90 = vmatpush2.xpose.msra.mxu0 0.0
    %91 = vmatprep.subr.mxu0 0.0
    %92 = vmatpush2.xpose.msra.mxu0 0.0
    %93 = vmatprep.subr.mxu0 0.0
    %94 = vmatpush2.xpose.msra.mxu0 0.0
    %95 = vmatprep.subr.mxu0 0.0
    %96 = vmatpush2.xpose.msra.mxu0 0.0
    %97 = vmatprep.subr.mxu0 0.0
    %98 = vmatpush2.xpose.msra.mxu0 0.0
    %99 = vmatprep.subr.mxu0 0.0
    %100 = vmatpush2.xpose.msra.mxu0 0.0
    %101 = vmatprep.subr.mxu0 0.0
    %102 = vmatpush2.xpose.msra.mxu0 0.0
    %103 = vmatprep.subr.mxu0 0.0
    %104 = vmatpush2.xpose.msra.mxu0 0.0
    %105 = vmatprep.subr.mxu0 0.0
    %106 = vmatpush2.xpose.msra.mxu0 0.0
    %107 = vmatprep.subr.mxu0 0.0
    %108 = vmatpush2.xpose.msra.mxu0 0.0
    %109 = vmatprep.subr.mxu0 0.0
    %110 = vmatpush2.xpose.msra.mxu0 0.0
    %111 = vmatprep.subr.mxu0 0.0
    %112 = vmatpush2.xpose.msra.mxu0 0.0
    %113 = vmatprep.subr.mxu0 0.0
    %114 = vmatpush2.xpose.msra.mxu0 0.0
    %115 = vmatprep.mubr.f32.mxu0 0.0
    %116 = vmatmul.mubr.f32.gmra.mxu0 %v43
    %v117 = vpop.f32.mrf.mxu0
    %v118 = vadd.f32 0.0, %v117
    %v119 = vpop.f32.mrf.mxu0
    %120 = vdwg.mxu0
    %vm121 = vcmask 130048
    %122 = vst.msk [vmem:[#allocation7] sm:$0xff] %vm121, %v118
    // Predicated region
    $region18: #{tpu_custom_call.1} parent=1 // pred_check
      _
    $region19: #{tpu_custom_call.1} parent=1 // pred_check_branch
      %124 = sbr.rel (0) target = $region21
    $region20: #{tpu_custom_call.1} parent=1 // pred_region
      %s126 = ssub.s32 128, 128
      %127 = vsyncadd [#allocation4], %s126
      %s129 = sshll.u32 [#allocation7], 4
      %s130 = int_to_ptr.vmem [resolvable:$true] %s129
      %132 = dma.vmem_to_hbm [thread:$0]  %s130, 128, %s2, [#allocation4]
    $region21: #{tpu_custom_call.1} parent=1 // pred_fallthru
      _
    // Predicated region
    $region22: #{tpu_custom_call.1} parent=1 // pred_check
      _
    $region23: #{tpu_custom_call.1} parent=1 // pred_check_branch
      %134 = sbr.rel (0) target = $region25
    $region24: #{tpu_custom_call.1} parent=1 // pred_region
      %135 = dma.done [#allocation4], 128
    $region25: #{tpu_custom_call.1} parent=1 // pred_fallthru
      _
    %136 = vsyncpa [#allocation3], 1
    %137 = vsyncpa [#allocation6], 1
    %138 = vsyncpa [#allocation4], 1

</llo_original>
